<compile_context>
chip_gen: v5e
topology: v5e:2x2
jax: 0.10.0
libtpu: 0.0.40
codegen_flags: <defaults>
</compile_context>

<pallas_src>
import functools
from dataclasses import dataclass

import numpy as np
import jax
import jax.numpy as jnp
from jax.experimental import pallas as pl
from jax.experimental.pallas import tpu as pltpu

_LANE = 128
_SUBLANE = 8


# ----------------------------------------------------------------------------
# small host-side helpers
# ----------------------------------------------------------------------------
def _cdiv(a, b):
    return -(-a // b)


def _round_up(x, m):
    return _cdiv(x, m) * m


def _num_tensorcores():
    """Best-effort TC-per-chip count (v7x has 2; v5e/v6e have 1)."""
    try:
        kind = jax.devices()[0].device_kind.lower()
    except Exception:
        return 1
    return 2 if "v7" in kind else 1


def _batch_plan(b, bt_max=32):
    """Pick (batch_block, num_grid_steps).

    Large Bt amortizes the ~0.35us per-grid-step overhead.  Only on
    multi-TensorCore chips (v7x) do we force >= num_tc grid steps, rounded to a
    multiple of num_tc so the `parallel` grid axis splits evenly across cores;
    on single-TC chips (v5e/v6e) a single step is best."""
    n_tc = _num_tensorcores()
    nsteps = _cdiv(b, bt_max)
    if n_tc > 1 and b >= n_tc:
        nsteps = max(nsteps, n_tc)
        nsteps = _round_up(nsteps, n_tc)
    bt = _cdiv(b, nsteps)
    return bt, nsteps


def _orientation(n_pred, n_gt):
    """Put the axis that wastes less padding on the lane (128) axis.

    Returns (transposed, sublane_padded, lane_padded).  transposed=True means
    the device tile is (B, num_gt, num_pred) (pred on lanes)."""
    sub_nt, lane_nt = _round_up(n_pred, _SUBLANE), _round_up(n_gt, _LANE)
    sub_t, lane_t = _round_up(n_gt, _SUBLANE), _round_up(n_pred, _LANE)
    if sub_t * lane_t < sub_nt * lane_nt:
        return True, sub_t, lane_t
    return False, sub_nt, lane_nt


def _pad_axis(x, axis, target):
    pad = target - x.shape[axis]
    if pad <= 0:
        return x
    widths = [(0, 0)] * x.ndim
    widths[axis] = (0, pad)
    return jnp.pad(x, widths)


# ----------------------------------------------------------------------------
# Pallas kernels (one (Bt, SUBp, LANEp) lane-dense tile per grid step)
#
# "row" operand: features along sublanes, the long entity axis on lanes,
#                shape (Bt, n_feat, LANEp).
# "col" operand: the other entity on sublanes, features on the short last
#                axis, shape (Bt, SUBp, n_feat).
# logits_in_row == True  -> row operand is pred-side (transposed orientation).
# ----------------------------------------------------------------------------
def _box_cost_kernel(row_ref, col_ref, out_ref, *, ce_w, logits_in_row):
    """Box L1 (x,y; rec_w pre-folded into coords) + stable binary-CE cost."""
    row = row_ref[...]                      # (Bt, 3, L)
    col = col_ref[...]                      # (Bt, S, 3)
    rx, ry, rz = row[:, 0:1, :], row[:, 1:2, :], row[:, 2:3, :]
    cx, cy, cz = col[:, :, 0:1], col[:, :, 1:2], col[:, :, 2:3]
    lg, mask = (rz, cz) if logits_in_row else (cz, rz)

    # numerically-stable BCE-with-logits on the small broadcast operand,
    # ce_w folded in:  ce_w*ce = ce_w*(lg + helper) - ce_w*mask*lg
    max_val = jnp.maximum(-lg, 0.0)
    helper = max_val + jnp.log(jnp.exp(-max_val) + jnp.exp(-lg - max_val))
    base = ce_w * (lg + helper)
    neg = (-ce_w) * lg

    l1 = jnp.abs(rx - cx) + jnp.abs(ry - cy)          # (Bt, S, L), rec_w folded
    out_ref[...] = base + mask * (neg + l1)


def _box_cost_multiclass_kernel(row_ref, col_ref, out_ref, *, ce_w, nc,
                                logits_in_row):
    """Box L1 (masked by the raw class label — faithful to the torch reference)
    + multiclass CE (-log_softmax gathered at the gt class)."""
    row = row_ref[...]
    col = col_ref[...]
    rx, ry = row[:, 0:1, :], row[:, 1:2, :]
    cx, cy = col[:, :, 0:1], col[:, :, 1:2]

    if logits_in_row:                       # pred on lanes
        logits = row[:, 2:2 + nc, :]        # (Bt, NC, L)
        labels = col[:, :, 2:3]             # (Bt, S, 1)
        m = jnp.max(logits, axis=1, keepdims=True)
        lse = m + jnp.log(jnp.sum(jnp.exp(logits - m), axis=1, keepdims=True))
        log_probs = logits - lse

        def lp_c(c):
            return log_probs[:, c:c + 1, :]             # (Bt, 1, L)
    else:                                   # gt on lanes
        logits = col[:, :, 2:2 + nc]        # (Bt, S, NC)
        labels = row[:, 2:3, :]             # (Bt, 1, L)
        m = jnp.max(logits, axis=-1, keepdims=True)
        lse = m + jnp.log(jnp.sum(jnp.exp(logits - m), axis=-1, keepdims=True))
        log_probs = logits - lse

        def lp_c(c):
            return log_probs[:, :, c:c + 1]              # (Bt, S, 1)

    # Per-class VPU select/accumulate: NC is tiny so this beats a one-hot MXU
    # matmul.  TODO(synk): for NC >~ 8 switch to a batched lax.dot_general on
    # the otherwise-idle MXU to free 2*NC full-tile VALU ops.
    ce = jnp.zeros(out_ref.shape, jnp.float32)
    for c in range(nc):                                  # static unroll
        sel = (labels == float(c)).astype(jnp.float32)
        ce = ce + sel * ((-ce_w) * lp_c(c))

    l1 = jnp.abs(rx - cx) + jnp.abs(ry - cy)             # rec_w folded
    out_ref[...] = ce + labels * l1                      # faithful: weight = raw label


def _line_cost_kernel(row_ref, col_ref, out_ref, *, ce_w, n_pts, logits_in_row):
    """Line L1 (sum over xy, mean over points; rec_w/P pre-folded into coords)
    + stable binary-CE cost."""
    row = row_ref[...]                      # (Bt, 2P+1, L)
    col = col_ref[...]                      # (Bt, S, 2P+1)
    rz = row[:, 2 * n_pts:2 * n_pts + 1, :]
    cz = col[:, :, 2 * n_pts:2 * n_pts + 1]
    lg, mask = (rz, cz) if logits_in_row else (cz, rz)

    max_val = jnp.maximum(-lg, 0.0)
    helper = max_val + jnp.log(jnp.exp(-max_val) + jnp.exp(-lg - max_val))
    base = ce_w * (lg + helper)
    neg = (-ce_w) * lg

    # Per-point accumulation; every live tensor is lane-dense (Bt, S, L), and
    # the two per-point updates are fused into a single accumulator add.
    acc = jnp.zeros(out_ref.shape, jnp.float32)
    for p in range(n_pts):                               # static unroll, P small
        dx = jnp.abs(row[:, p:p + 1, :] - col[:, :, p:p + 1])
        dy = jnp.abs(row[:, n_pts + p:n_pts + p + 1, :]
                     - col[:, :, n_pts + p:n_pts + p + 1])
        acc = acc + (dx + dy)

    out_ref[...] = base + mask * (neg + acc)


# ----------------------------------------------------------------------------
# pallas_call launcher
# ----------------------------------------------------------------------------
def _launch(kernel, row_pack, col_pack, bt, nsteps, sub_p, lane_p, *,
            flops_per_out):
    bp = bt * nsteps
    row_block = (bt,) + tuple(row_pack.shape[1:])
    col_block = (bt,) + tuple(col_pack.shape[1:])
    n_out = bp * sub_p * lane_p

    cost_est = pl.CostEstimate(
        flops=int(flops_per_out) * int(n_out),
        transcendentals=2 * bp * (sub_p + lane_p),
        bytes_accessed=4 * int(row_pack.size + col_pack.size + n_out))

    tile_bytes = 4 * (bt * int(np.prod(row_pack.shape[1:]))
                      + bt * int(np.prod(col_pack.shape[1:]))
                      + bt * sub_p * lane_p)
    # double-buffered in/out tiles, with headroom; stays under v7x's 64 MiB.
    vmem_limit = int(min(max(6 * tile_bytes, 16 << 20), 48 << 20))

    return pl.pallas_call(
        kernel,
        out_shape=jax.ShapeDtypeStruct((bp, sub_p, lane_p), jnp.float32),
        grid=(nsteps,),
        in_specs=[
            pl.BlockSpec(row_block, lambda i: (i, 0, 0)),
            pl.BlockSpec(col_block, lambda i: (i, 0, 0)),
        ],
        out_specs=pl.BlockSpec((bt, sub_p, lane_p), lambda i: (i, 0, 0)),
        compiler_params=pltpu.CompilerParams(
            dimension_semantics=("parallel",),
            vmem_limit_bytes=vmem_limit),
        cost_estimate=cost_est,
    )(row_pack, col_pack)


def finalize_cost(cost_padded, info):
    """Host-side crop (and orientation restore) to (batch, num_pred, num_gt).

    Done in numpy: a device-side slice would re-read + re-write the whole cost
    tensor.  The padded rows/cols MUST be cropped before Hungarian matching."""
    c = np.asarray(jax.device_get(cost_padded))
    b, n_pred, n_gt = info["batch"], info["num_pred"], info["num_gt"]
    if info["transposed"]:
        return np.transpose(c[:b, :n_gt, :n_pred], (0, 2, 1))
    return c[:b, :n_pred, :n_gt]


# ----------------------------------------------------------------------------
# cost wrappers (packing / padding glue in plain JAX; return padded device
# tensor + orientation info)
# ----------------------------------------------------------------------------
def box_cost(gt_states, pred_states, gt_mask, pred_logits, ce_w, rec_w,
             bt_max=32):
    gt_states = gt_states.astype(jnp.float32)
    pred_states = pred_states.astype(jnp.float32)
    gt_mask = gt_mask.astype(jnp.float32)
    pred_logits = pred_logits.astype(jnp.float32)

    b, ng = gt_mask.shape
    n_pred = pred_states.shape[1]
    transposed, sub_p, lane_p = _orientation(n_pred, ng)
    bt, nsteps = _batch_plan(b, bt_max)
    bp = bt * nsteps

    gt_xy = rec_w * gt_states[..., 0:2]      # rec_w >= 0: |w a - w b| = w |a-b|
    pr_xy = rec_w * pred_states[..., 0:2]

    if transposed:   # pred on lanes (row operand), gt on sublanes (col operand)
        row_pack = jnp.concatenate(
            [jnp.transpose(pr_xy, (0, 2, 1)), pred_logits[:, None, :]], axis=1)
        col_pack = jnp.concatenate([gt_xy, gt_mask[:, :, None]], axis=2)
    else:            # gt on lanes, pred on sublanes
        row_pack = jnp.concatenate(
            [jnp.transpose(gt_xy, (0, 2, 1)), gt_mask[:, None, :]], axis=1)
        col_pack = jnp.concatenate([pr_xy, pred_logits[:, :, None]], axis=2)

    row_pack = _pad_axis(_pad_axis(row_pack, 2, lane_p), 0, bp)   # (Bp, 3, LANEp)
    col_pack = _pad_axis(_pad_axis(col_pack, 1, sub_p), 0, bp)    # (Bp, SUBp, 3)

    kernel = functools.partial(_box_cost_kernel, ce_w=float(ce_w),
                               logits_in_row=transposed)
    out = _launch(kernel, row_pack, col_pack, bt, nsteps, sub_p, lane_p,
                  flops_per_out=8)
    return out, dict(transposed=transposed, batch=b, num_pred=n_pred, num_gt=ng)


def box_cost_multiclass(gt_states, pred_states, gt_labels, pred_logits, ce_w,
                        rec_w, bt_max=32):
    gt_states = gt_states.astype(jnp.float32)
    pred_states = pred_states.astype(jnp.float32)
    labels_f = gt_labels.astype(jnp.float32)
    pred_logits = pred_logits.astype(jnp.float32)

    b, ng = labels_f.shape
    n_pred, nc = pred_logits.shape[1], pred_logits.shape[2]
    transposed, sub_p, lane_p = _orientation(n_pred, ng)
    bt, nsteps = _batch_plan(b, bt_max)
    bp = bt * nsteps

    gt_xy = rec_w * gt_states[..., 0:2]
    pr_xy = rec_w * pred_states[..., 0:2]

    if transposed:   # pred (2+NC feats) on lanes, gt (x,y,label) on sublanes
        row_pack = jnp.concatenate(
            [jnp.transpose(pr_xy, (0, 2, 1)),
             jnp.transpose(pred_logits, (0, 2, 1))], axis=1)       # (B, 2+NC, NP)
        col_pack = jnp.concatenate([gt_xy, labels_f[:, :, None]], axis=2)
    else:
        row_pack = jnp.concatenate(
            [jnp.transpose(gt_xy, (0, 2, 1)), labels_f[:, None, :]], axis=1)
        col_pack = jnp.concatenate([pr_xy, pred_logits], axis=2)   # (B, NP, 2+NC)

    row_pack = _pad_axis(_pad_axis(row_pack, 2, lane_p), 0, bp)
    col_pack = _pad_axis(_pad_axis(col_pack, 1, sub_p), 0, bp)

    kernel = functools.partial(_box_cost_multiclass_kernel, ce_w=float(ce_w),
                               nc=int(nc), logits_in_row=transposed)
    out = _launch(kernel, row_pack, col_pack, bt, nsteps, sub_p, lane_p,
                  flops_per_out=6 + 3 * int(nc))
    return out, dict(transposed=transposed, batch=b, num_pred=n_pred, num_gt=ng)


def line_cost(gt_states, pred_states, gt_mask, pred_logits, ce_w, rec_w,
              bt_max=32):
    gt_states = gt_states.astype(jnp.float32)        # (B, NG, P, 2)
    pred_states = pred_states.astype(jnp.float32)    # (B, NP, P, 2)
    gt_mask = gt_mask.astype(jnp.float32)
    pred_logits = pred_logits.astype(jnp.float32)

    b, ng, n_pts, _ = gt_states.shape
    n_pred = pred_states.shape[1]
    transposed, sub_p, lane_p = _orientation(n_pred, ng)
    bt, nsteps = _batch_plan(b, bt_max)
    bp = bt * nsteps

    scale = rec_w / float(n_pts)                      # fold rec_w and the 1/P mean
    gt_x, gt_y = scale * gt_states[..., 0], scale * gt_states[..., 1]   # (B, NG, P)
    pr_x, pr_y = scale * pred_states[..., 0], scale * pred_states[..., 1]

    if transposed:   # pred on lanes, gt on sublanes
        row_pack = jnp.concatenate(
            [jnp.transpose(pr_x, (0, 2, 1)), jnp.transpose(pr_y, (0, 2, 1)),
             pred_logits[:, None, :]], axis=1)                      # (B, 2P+1, NP)
        col_pack = jnp.concatenate([gt_x, gt_y, gt_mask[:, :, None]], axis=2)
    else:
        row_pack = jnp.concatenate(
            [jnp.transpose(gt_x, (0, 2, 1)), jnp.transpose(gt_y, (0, 2, 1)),
             gt_mask[:, None, :]], axis=1)                          # (B, 2P+1, NG)
        col_pack = jnp.concatenate(
            [pr_x, pr_y, pred_logits[:, :, None]], axis=2)          # (B, NP, 2P+1)

    row_pack = _pad_axis(_pad_axis(row_pack, 2, lane_p), 0, bp)
    col_pack = _pad_axis(_pad_axis(col_pack, 1, sub_p), 0, bp)

    kernel = functools.partial(_line_cost_kernel, ce_w=float(ce_w),
                               n_pts=int(n_pts), logits_in_row=transposed)
    out = _launch(kernel, row_pack, col_pack, bt, nsteps, sub_p, lane_p,
                  flops_per_out=5 + 6 * int(n_pts))
    return out, dict(transposed=transposed, batch=b, num_pred=n_pred, num_gt=ng)


# ----------------------------------------------------------------------------
# Module equivalent
# ----------------------------------------------------------------------------
@dataclass
class RVAEConfig:
    box_ce_weight: float = 2.0
    box_reconstruction_weight: float = 1.0
    line_ce_weight: float = 0.5
    line_reconstruction_weight: float = 1.0
    multiclass: bool = False


class RVAEHungarianMatching:
    """JAX/Pallas port of the RVAE hungarian matching module."""

    def __init__(self, config):
        self._config = config

    def forward(self, predictions, targets):
        # Matches the PyTorch module: forward is a no-op (`pass`).
        return None

    def _compute_cost_padded(self, predictions, targets, tgt_type):
        pred_states = predictions[tgt_type]["vector"]
        gt_states = targets[tgt_type]["vector"]
        pred_logits = predictions[tgt_type]["mask"]
        if tgt_type == "VEHICLES" and self._config.multiclass:
            gt_mask = targets[tgt_type]["class"]
        else:
            gt_mask = targets[tgt_type]["mask"]

        # TODO(synk): when VEHICLES + LANES run back-to-back, the two small
        # pallas_calls could be fused into one multi-output launch to amortize
        # per-call dispatch overhead.
        if tgt_type in ["LANES", "LANE_DIVIDERS"]:
            return line_cost(gt_states, pred_states, gt_mask, pred_logits,
                             self._config.line_ce_weight,
                             self._config.line_reconstruction_weight)
        if self._config.multiclass:
            return box_cost_multiclass(gt_states, pred_states, gt_mask,
                                       pred_logits, self._config.box_ce_weight,
                                       self._config.box_reconstruction_weight)
        return box_cost(gt_states, pred_states, gt_mask, pred_logits,
                        self._config.box_ce_weight,
                        self._config.box_reconstruction_weight)

    def compute(self, predictions, targets, tgt_type):
        cost_padded, info = self._compute_cost_padded(predictions, targets, tgt_type)
        cost_np = finalize_cost(cost_padded, info)   # host-side crop + reorient
        # TODO(synk): linear_sum_assignment (Hungarian) is a sequential host-side
        # algorithm with no clean Pallas/TPU equivalent; run it on CPU via scipy
        # when available (ideally overlapped with the next batch's cost kernel).
        try:
            from scipy.optimize import linear_sum_assignment
            matching = [(np.asarray(i, dtype=np.int64), np.asarray(j, dtype=np.int64))
                        for i, j in (linear_sum_assignment(c) for c in cost_np)]
        except ImportError:
            matching = None
        return {f"{tgt_type.lower()}_matching": matching}


# ----------------------------------------------------------------------------
# Pure-JAX references (mirroring the torch code) for correctness checking
# ----------------------------------------------------------------------------
def ref_box_l1(gt, pred, mask):
    g = gt[:, :, None, 0:2]
    p = pred[:, None, :, 0:2]
    l1 = mask[..., None] * jnp.abs(g - p).sum(-1)        # (B, NG, NP)
    return jnp.transpose(l1, (0, 2, 1))


def ref_ce(mask, logits):
    m = mask[:, :, None].astype(jnp.float32)
    lg = logits[:, None, :]
    mv = jnp.maximum(-lg, 0.0)
    helper = mv + jnp.log(jnp.exp(-mv) + jnp.exp(-lg - mv))
    ce = (1.0 - m) * lg + helper                          # (B, NG, NP)
    return jnp.transpose(ce, (0, 2, 1))


def ref_line_l1(gt, pred, mask):
    g = gt[:, :, None]
    p = pred[:, None]
    l1 = mask[..., None] * jnp.abs(g - p).sum(-1).mean(-1)
    return jnp.transpose(l1, (0, 2, 1))


def ref_ce_multiclass(labels, logits):
    lp = jax.nn.log_softmax(logits, axis=-1)              # (B, NP, NC)
    onehot = jax.nn.one_hot(labels, logits.shape[-1], dtype=jnp.float32)
    return -jnp.einsum("bpc,bgc->bpg", lp, onehot)


# ----------------------------------------------------------------------------
# Demo / test
# ----------------------------------------------------------------------------
if __name__ == "__main__":
    cfg = RVAEConfig(multiclass=False)
    cfg_mc = RVAEConfig(multiclass=True)
    B, S, P, NC = 2, 5, 8, 4

    def make_inputs(key, b, n_pred, n_gt, s, p, nc):
        ks = jax.random.split(key, 10)
        return dict(
            box_pred=jax.random.normal(ks[0], (b, n_pred, s), jnp.float32),
            box_gt=jax.random.normal(ks[1], (b, n_gt, s), jnp.float32),
            logit=jax.random.normal(ks[2], (b, n_pred), jnp.float32),
            logit_mc=jax.random.normal(ks[3], (b, n_pred, nc), jnp.float32),
            mask=(jax.random.uniform(ks[4], (b, n_gt)) > 0.4).astype(jnp.float32),
            cls=jax.random.randint(ks[5], (b, n_gt), 0, nc).astype(jnp.int32),
            line_pred=jax.random.normal(ks[6], (b, n_pred, p, 2), jnp.float32),
            line_gt=jax.random.normal(ks[7], (b, n_gt, p, 2), jnp.float32),
            line_logit=jax.random.normal(ks[8], (b, n_pred), jnp.float32),
            line_mask=(jax.random.uniform(ks[9], (b, n_gt)) > 0.4).astype(jnp.float32),
        )

    key = jax.random.PRNGKey(0)
    k_a, k_b = jax.random.split(key)

    # Exercise both lane orientations: (NP > NG) -> pred on lanes (transposed),
    # (NG >> NP) -> gt on lanes (non-transposed).
    for (n_pred, n_gt), k in (((16, 8), k_a), ((8, 40), k_b)):
        d = make_inputs(k, B, n_pred, n_gt, S, P, NC)

        # --- box, binary CE ---
        cost, info = box_cost(d["box_gt"], d["box_pred"], d["mask"], d["logit"],
                              cfg.box_ce_weight, cfg.box_reconstruction_weight)
        jax.block_until_ready(cost)
        ref = (cfg.box_ce_weight * ref_ce(d["mask"], d["logit"])
               + cfg.box_reconstruction_weight
               * ref_box_l1(d["box_gt"], d["box_pred"], d["mask"]))
        np.testing.assert_allclose(finalize_cost(cost, info), np.asarray(ref),
                                   rtol=1e-5, atol=2e-5)

        # --- box, multiclass CE ---
        cost, info = box_cost_multiclass(d["box_gt"], d["box_pred"], d["cls"],
                                         d["logit_mc"], cfg_mc.box_ce_weight,
                                         cfg_mc.box_reconstruction_weight)
        jax.block_until_ready(cost)
        ref = (cfg_mc.box_ce_weight * ref_ce_multiclass(d["cls"], d["logit_mc"])
               + cfg_mc.box_reconstruction_weight
               * ref_box_l1(d["box_gt"], d["box_pred"],
                            d["cls"].astype(jnp.float32)))
        np.testing.assert_allclose(finalize_cost(cost, info), np.asarray(ref),
                                   rtol=1e-5, atol=2e-5)

        # --- line L1, binary CE ---
        cost, info = line_cost(d["line_gt"], d["line_pred"], d["line_mask"],
                               d["line_logit"], cfg.line_ce_weight,
                               cfg.line_reconstruction_weight)
        jax.block_until_ready(cost)
        ref = (cfg.line_ce_weight * ref_ce(d["line_mask"], d["line_logit"])
               + cfg.line_reconstruction_weight
               * ref_line_l1(d["line_gt"], d["line_pred"], d["line_mask"]))
        np.testing.assert_allclose(finalize_cost(cost, info), np.asarray(ref),
                                   rtol=1e-5, atol=2e-5)

    # Exercise the full module interface (Hungarian on host if scipy present).
    d = make_inputs(k_a, B, 16, 8, S, P, NC)
    predictions = {"VEHICLES": {"vector": d["box_pred"], "mask": d["logit"]},
                   "LANES": {"vector": d["line_pred"], "mask": d["line_logit"]}}
    targets = {"VEHICLES": {"vector": d["box_gt"], "mask": d["mask"],
                            "class": d["cls"]},
               "LANES": {"vector": d["line_gt"], "mask": d["line_mask"]}}
    matcher = RVAEHungarianMatching(cfg)
    _ = matcher.forward(predictions, targets)
    _ = matcher.compute(predictions, targets, "VEHICLES")
    _ = matcher.compute(predictions, targets, "LANES")

    matcher_mc = RVAEHungarianMatching(cfg_mc)
    predictions_mc = {"VEHICLES": {"vector": d["box_pred"], "mask": d["logit_mc"]}}
    _ = matcher_mc.compute(predictions_mc, targets, "VEHICLES")

    print("KERNEL_OK")
</pallas_src>

<mosaic_0001>
module attributes {stable_mosaic.version = 11 : i64} {
  func.func @_box_cost_kernel(%arg0: i32, %arg1: memref<2x3x128xf32, #tpu.memory_space<vmem>>, %arg2: memref<2x8x3xf32, #tpu.memory_space<vmem>>, %arg3: memref<2x8x128xf32, #tpu.memory_space<vmem>>) attributes {dimension_semantics = [#tpu.dimension_semantics<parallel>], iteration_bounds = array<i64: 1>, scalar_prefetch = 0 : i64, scratch_operands = 0 : i64, tpu.core_type = #tpu.core_type<tc>, window_params = [{transform_indices = @transform_0, window_bounds = array<i64: 2, 3, 128>}, {transform_indices = @transform_1, window_bounds = array<i64: 2, 8, 3>}, {transform_indices = @transform_2, window_bounds = array<i64: 2, 8, 128>}]} {
    %c0 = arith.constant 0 : index
    %c0_0 = arith.constant 0 : index
    %c0_1 = arith.constant 0 : index
    %0 = vector.load %arg1[%c0, %c0_0, %c0_1] : memref<2x3x128xf32, #tpu.memory_space<vmem>>, vector<2x3x128xf32>
    %c0_2 = arith.constant 0 : index
    %c0_3 = arith.constant 0 : index
    %c0_4 = arith.constant 0 : index
    %1 = vector.load %arg2[%c0_2, %c0_3, %c0_4] : memref<2x8x3xf32, #tpu.memory_space<vmem>>, vector<2x8x3xf32>
    %2 = vector.extract_strided_slice %0 {offsets = [0, 0, 0], sizes = [2, 1, 128], strides = [1, 1, 1]} : vector<2x3x128xf32> to vector<2x1x128xf32>
    %3 = vector.extract_strided_slice %0 {offsets = [0, 1, 0], sizes = [2, 1, 128], strides = [1, 1, 1]} : vector<2x3x128xf32> to vector<2x1x128xf32>
    %4 = vector.extract_strided_slice %0 {offsets = [0, 2, 0], sizes = [2, 1, 128], strides = [1, 1, 1]} : vector<2x3x128xf32> to vector<2x1x128xf32>
    %5 = vector.extract_strided_slice %1 {offsets = [0, 0, 0], sizes = [2, 8, 1], strides = [1, 1, 1]} : vector<2x8x3xf32> to vector<2x8x1xf32>
    %6 = vector.extract_strided_slice %1 {offsets = [0, 0, 1], sizes = [2, 8, 1], strides = [1, 1, 1]} : vector<2x8x3xf32> to vector<2x8x1xf32>
    %7 = vector.extract_strided_slice %1 {offsets = [0, 0, 2], sizes = [2, 8, 1], strides = [1, 1, 1]} : vector<2x8x3xf32> to vector<2x8x1xf32>
    %cst = arith.constant 0.000000e+00 : f32
    %8 = vector.broadcast %cst : f32 to vector<2x1x128xf32>
    %9 = arith.subf %8, %4 : vector<2x1x128xf32>
    %cst_5 = arith.constant 0.000000e+00 : f32
    %10 = vector.broadcast %cst_5 : f32 to vector<2x1x128xf32>
    %11 = arith.maximumf %9, %10 : vector<2x1x128xf32>
    %cst_6 = arith.constant 0.000000e+00 : f32
    %12 = vector.broadcast %cst_6 : f32 to vector<2x1x128xf32>
    %13 = arith.subf %12, %11 : vector<2x1x128xf32>
    %14 = math.exp %13 : vector<2x1x128xf32>
    %cst_7 = arith.constant 0.000000e+00 : f32
    %15 = vector.broadcast %cst_7 : f32 to vector<2x1x128xf32>
    %16 = arith.subf %15, %4 : vector<2x1x128xf32>
    %17 = arith.subf %16, %11 : vector<2x1x128xf32>
    %18 = math.exp %17 : vector<2x1x128xf32>
    %19 = arith.addf %14, %18 : vector<2x1x128xf32>
    %20 = math.log %19 : vector<2x1x128xf32>
    %21 = arith.addf %11, %20 : vector<2x1x128xf32>
    %22 = arith.addf %4, %21 : vector<2x1x128xf32>
    %cst_8 = arith.constant 2.000000e+00 : f32
    %23 = vector.broadcast %cst_8 : f32 to vector<2x1x128xf32>
    %24 = arith.mulf %23, %22 : vector<2x1x128xf32>
    %cst_9 = arith.constant -2.000000e+00 : f32
    %25 = vector.broadcast %cst_9 : f32 to vector<2x1x128xf32>
    %26 = arith.mulf %25, %4 : vector<2x1x128xf32>
    %27 = vector.broadcast %2 : vector<2x1x128xf32> to vector<2x8x128xf32>
    %28 = vector.broadcast %5 : vector<2x8x1xf32> to vector<2x8x128xf32>
    %29 = arith.subf %27, %28 : vector<2x8x128xf32>
    %30 = math.absf %29 : vector<2x8x128xf32>
    %31 = vector.broadcast %3 : vector<2x1x128xf32> to vector<2x8x128xf32>
    %32 = vector.broadcast %6 : vector<2x8x1xf32> to vector<2x8x128xf32>
    %33 = arith.subf %31, %32 : vector<2x8x128xf32>
    %34 = math.absf %33 : vector<2x8x128xf32>
    %35 = arith.addf %30, %34 : vector<2x8x128xf32>
    %36 = vector.broadcast %26 : vector<2x1x128xf32> to vector<2x8x128xf32>
    %37 = arith.addf %36, %35 : vector<2x8x128xf32>
    %38 = vector.broadcast %7 : vector<2x8x1xf32> to vector<2x8x128xf32>
    %39 = arith.mulf %38, %37 : vector<2x8x128xf32>
    %40 = vector.broadcast %24 : vector<2x1x128xf32> to vector<2x8x128xf32>
    %41 = arith.addf %40, %39 : vector<2x8x128xf32>
    %c0_10 = arith.constant 0 : index
    %c0_11 = arith.constant 0 : index
    %c0_12 = arith.constant 0 : index
    %42 = vector.load %arg3[%c0_10, %c0_11, %c0_12] : memref<2x8x128xf32, #tpu.memory_space<vmem>>, vector<2x8x128xf32>
    tpu.vector_store %arg3[%c0_10, %c0_11, %c0_12], %41 {strides = array<i32>} : memref<2x8x128xf32, #tpu.memory_space<vmem>>, vector<2x8x128xf32>,
    return
  }
  func.func @transform_0(%arg0: i32) -> (i32, i32, i32) {
    %c0_i32 = arith.constant 0 : i32
    %c0_i32_0 = arith.constant 0 : i32
    %c0_i32_1 = arith.constant 0 : i32
    return %arg0, %c0_i32, %c0_i32_0 : i32, i32, i32
  }
  func.func @transform_1(%arg0: i32) -> (i32, i32, i32) {
    %c0_i32 = arith.constant 0 : i32
    %c0_i32_0 = arith.constant 0 : i32
    %c0_i32_1 = arith.constant 0 : i32
    return %arg0, %c0_i32, %c0_i32_0 : i32, i32, i32
  }
  func.func @transform_2(%arg0: i32) -> (i32, i32, i32) {
    %c0_i32 = arith.constant 0 : i32
    %c0_i32_0 = arith.constant 0 : i32
    %c0_i32_1 = arith.constant 0 : i32
    return %arg0, %c0_i32, %c0_i32_0 : i32, i32, i32
  }
}

</mosaic_0001>

<llo_original>
// kernel: tpu_custom_call.1
$region0: #{tpu_custom_call.1}
  #allocation0 [shape = 'u32[]', space=smem, size = 0x4, offset = 0x4, fixed_abs, tag = 'smem constant byte address 0x4 - core index']
  #allocation1 [shape = 'u32[72,128]{1,0:T(1,128)}', space=vmem, size = 0x9000, scoped, tag = 'internal scratch']
  %s0 = inlined_call_operand.vmem [shape: f32[2,3,128], index: 0, kind: input, shape index: {}]
  %s1 = inlined_call_operand.vmem [shape: f32[2,8,3], index: 1, kind: input, shape index: {}]
  %s2 = inlined_call_operand.hbm [shape: f32[2,8,128], index: 2, kind: output, shape index: {}]
  %s3 = sld [smem:[#allocation0]]
  $region18: #{tpu_custom_call.1} parent=0
    _
  %s5 = ssub.s32 1, %s3
  %s6 = scalar_select 0, %s5, %s3
  $region1: #{tpu_custom_call.1} parent=0
    #allocation2 [shape = 'u8[8192]{0}', space=vmem, size = 0x2000, scoped, tag = 'output window, operand 0, single buffered']
    #allocation3 [shape = 's32[1]{0}', space=sflag, size = 0x4, scoped, tag = 'scoped memory for tpu_custom_call.1']
    %7 = vsyncpa [#allocation3], 0
    // Predicated region
    $region2: #{tpu_custom_call.1} parent=1 // pred_check
      _
    $region3: #{tpu_custom_call.1} parent=1 // pred_check_branch
      %9 = sbr.rel (0) target = $region5
    $region4: #{tpu_custom_call.1} parent=1 // pred_region
      _
    $region5: #{tpu_custom_call.1} parent=1 // pred_fallthru
      _
    // Predicated region
    $region6: #{tpu_custom_call.1} parent=1 // pred_check
      _
    $region7: #{tpu_custom_call.1} parent=1 // pred_check_branch
      %11 = sbr.rel (0) target = $region9
    $region8: #{tpu_custom_call.1} parent=1 // pred_region
      _
    $region9: #{tpu_custom_call.1} parent=1 // pred_fallthru
      _
    %v12 = vld [vmem:[%s0] sm:$0x7]
    %v13 = vld [vmem:[%s0 + $0x4] sm:$0x7]
    %v14 = vld [vmem:[%s1] sm:$0xff]
    %v15 = vld [vmem:[%s1 + $0x8] sm:$0xff]
    %v16 = vsub.f32 0.0, %v12
    %v17 = vsub.f32 0.0, %v13
    %v18 = vmax.f32 %v16, 0.0
    %v19 = vmax.f32 %v17, 0.0
    %v20 = vsub.f32 0.0, %v18
    %v21 = vsub.f32 0.0, %v19
    %v22 = vmul.f32 %v20, 1.442695
    %v23 = vpow.pop %v22
    %v24 = vmul.f32 %v21, 1.442695
    %v25 = vpow.pop %v24
    %v26 = vsub.f32 %v16, %v18
    %v27 = vsub.f32 %v17, %v19
    %v28 = vmul.f32 %v26, 1.442695
    %v29 = vpow.pop %v28
    %v30 = vmul.f32 %v27, 1.442695
    %v31 = vpow.pop %v30
    %v32 = vadd.f32 %v23, %v29
    %v33 = vadd.f32 %v25, %v31
    %v34 = vlog2.pop %v32
    %v35 = vmul.f32 %v34, 0.6931472
    %v36 = vlog2.pop %v33
    %v37 = vmul.f32 %v36, 0.6931472
    %v38 = vadd.f32 %v18, %v35
    %v39 = vadd.f32 %v19, %v37
    %v40 = vadd.f32 %v12, %v38
    %v41 = vadd.f32 %v13, %v39
    %v42 = vmul.f32 %v40, 2.0
    %v43 = vmul.f32 %v41, 2.0
    %v44 = vmul.f32 %v12, -2.0
    %v45 = vmul.f32 %v13, -2.0
    %v46 = vperm.slane %v12, 0
    %v47 = vperm.slane %v13, 0
    %49 = vset.pattern.permute.xlu0 0
    %50 = vperm.xlu0 %49, %v14
    %v51 = vpop.permute.xlu0 %50
    %54 = vset.pattern.permute.xlu0 0
    %55 = vperm.xlu0 %54, %v15
    %v56 = vpop.permute.xlu0 %55
    %v58 = vsub.f32 %v46, %v51
    %v59 = vsub.f32 %v47, %v56
    %v60 = vand.u32 2147483647, %v58
    %v61 = vand.u32 2147483647, %v59
    %v62 = vperm.slane %v12, 1
    %v63 = vperm.slane %v13, 1
    %64 = vset.pattern.permute.xlu0 1
    %65 = vperm.xlu0 %64, %v14
    %v66 = vpop.permute.xlu0 %65
    %68 = vset.pattern.permute.xlu0 1
    %69 = vperm.xlu0 %68, %v15
    %v70 = vpop.permute.xlu0 %69
    %v72 = vsub.f32 %v62, %v66
    %v73 = vsub.f32 %v63, %v70
    %v74 = vand.u32 2147483647, %v72
    %v75 = vand.u32 2147483647, %v73
    %v76 = vadd.f32 %v60, %v74
    %v77 = vadd.f32 %v61, %v75
    %v78 = vperm.slane %v44, 2
    %v79 = vperm.slane %v45, 2
    %v80 = vadd.f32 %v78, %v76
    %v81 = vadd.f32 %v79, %v77
    %82 = vset.pattern.permute.xlu0 2
    %83 = vperm.xlu0 %82, %v14
    %v84 = vpop.permute.xlu0 %83
    %86 = vset.pattern.permute.xlu0 2
    %87 = vperm.xlu0 %86, %v15
    %v88 = vpop.permute.xlu0 %87
    %v90 = vmul.f32 %v84, %v80
    %v91 = vmul.f32 %v88, %v81
    %v92 = vperm.slane %v42, 2
    %v93 = vperm.slane %v43, 2
    %v94 = vadd.f32 %v92, %v90
    %v95 = vadd.f32 %v93, %v91
    %96 = vst [vmem:[#allocation2] sm:$0xff] %v94
    %97 = vst [vmem:[#allocation2 + $0x8] sm:$0xff] %v95
    // Predicated region
    $region10: #{tpu_custom_call.1} parent=1 // pred_check
      _
    $region11: #{tpu_custom_call.1} parent=1 // pred_check_branch
      %99 = sbr.rel (0) target = $region13
    $region12: #{tpu_custom_call.1} parent=1 // pred_region
      %101 = vsyncadd [#allocation3], 0
      %s102 = sshll.u32 [#allocation2], 4
      %s103 = int_to_ptr.vmem [resolvable:$true] %s102
      %s104 = sshll.u32 %s2, 4
      %s105 = int_to_ptr.hbm [resolvable:$true] %s104
      %110 = dma.vmem_to_hbm [thread:$0]  %s103, 256, %s105, [#allocation3], 128, 128, 8
    $region13: #{tpu_custom_call.1} parent=1 // pred_fallthru
      _
    // Predicated region
    $region14: #{tpu_custom_call.1} parent=1 // pred_check
      _
    $region15: #{tpu_custom_call.1} parent=1 // pred_check_branch
      %112 = sbr.rel (0) target = $region17
    $region16: #{tpu_custom_call.1} parent=1 // pred_region
      %114 = dma.done [#allocation3], 256
    $region17: #{tpu_custom_call.1} parent=1 // pred_fallthru
      _
    %115 = vsyncpa [#allocation3], 1

</llo_original>
